<compile_context>
chip_gen: v7x
topology: tpu7x:2x2x1
jax: 0.10.0
libtpu: 0.0.40
codegen_flags: <defaults>
</compile_context>

<pallas_src>
import functools

import jax
import jax.numpy as jnp
from jax.experimental import pallas as pl
from jax.experimental.pallas import tpu as pltpu


# ---------------------------------------------------------------------------
# Kernels
# ---------------------------------------------------------------------------

def _se_kernel_batch(x_ref, w1t_ref, b1_ref, w2t_ref, b2_ref, o_ref, *, inv_hw):
    """Fused SE over a (Bt, C, HW) slab (used when C fills >= 1 sublane group)."""
    x = x_ref[...]                                                   # (Bt, C, HW)

    # Global average pool over the spatial lane axis, accumulated in f32.
    pooled = jnp.sum(x, axis=-1, dtype=jnp.float32) * inv_hw         # (Bt, C)

    # fc1 (C->R) + ReLU, fc2 (R->C) + sigmoid, all in f32.
    h = jnp.dot(pooled, w1t_ref[...],
                preferred_element_type=jnp.float32) + b1_ref[...]    # (Bt, R)
    h = jnp.maximum(h, 0.0)
    s = jnp.dot(h, w2t_ref[...],
                preferred_element_type=jnp.float32) + b2_ref[...]    # (Bt, C)
    s = jax.nn.sigmoid(s)

    # Channel-wise rescale in the native dtype.
    o_ref[...] = (x * s[:, :, None].astype(x.dtype)).astype(o_ref.dtype)


def _se_kernel_rows(x_ref, a1_ref, b1_ref, a2_ref, b2_ref, o_ref, *, inv_hw):
    """Fused SE over a row-packed (Bt*C, HW) slab (small-C path).

    a1 = kron(I_Bt, w1)  (Bt*R, Bt*C),  a2 = kron(I_Bt, w2)  (Bt*C, Bt*R),
    biases tiled per batch as column vectors, so the per-batch FCs become one
    block-diagonal matmul and no in-kernel reshape is needed.
    """
    x = x_ref[...]                                                   # (Rt, HW)
    pooled = jnp.sum(x, axis=-1, keepdims=True,
                     dtype=jnp.float32) * inv_hw                     # (Rt, 1)

    h = jnp.dot(a1_ref[...], pooled,
                preferred_element_type=jnp.float32) + b1_ref[...]    # (Bt*R, 1)
    h = jnp.maximum(h, 0.0)
    s = jnp.dot(a2_ref[...], h,
                preferred_element_type=jnp.float32) + b2_ref[...]    # (Rt, 1)
    s = jax.nn.sigmoid(s)

    o_ref[...] = (x * s.astype(x.dtype)).astype(o_ref.dtype)


def _pool_kernel(x_ref, o_ref, *, inv_hw, hw, hw_t, needs_mask):
    """Spatial-tiled global average pool (fallback path). Accumulator output."""
    si = pl.program_id(1)
    x = x_ref[...]                                                   # (1, C, hw_t)
    if needs_mask:
        lane = jax.lax.broadcasted_iota(jnp.int32, x.shape, 2)
        x = jnp.where(si * hw_t + lane < hw, x, jnp.zeros_like(x))
    part = jnp.sum(x, axis=-1, keepdims=True, dtype=jnp.float32)     # (1, C, 1)

    @pl.when(si == 0)
    def _():
        o_ref[...] = jnp.zeros_like(o_ref)

    o_ref[...] += part

    @pl.when(si == pl.num_programs(1) - 1)
    def _():
        o_ref[...] = o_ref[...] * inv_hw


def _rescale_kernel(x_ref, s_ref, o_ref):
    """Spatial-tiled rescale (fallback path): out = x * scale (scale is (1,C,1))."""
    o_ref[...] = (x_ref[...] * s_ref[...]).astype(o_ref.dtype)


# ---------------------------------------------------------------------------
# Tiling helpers
# ---------------------------------------------------------------------------

def _vmem_ceiling():
    """Generation-aware scoped-VMEM ceiling (physical capacity minus headroom)."""
    try:
        cap = int(pltpu.get_tpu_info().vmem_capacity_bytes)
    except Exception:
        cap = 64 << 20          # conservative: v7x per-TC physical VMEM
    return max(32 << 20, cap - (16 << 20))


def _choose_bt_batch(B, per_batch_bytes, target_bytes, max_bytes):
    """Largest Bt dividing B with block <= target and >= min(B,4) grid steps."""
    min_steps = min(B, 4)
    best = 1
    for bt in range(2, B + 1):
        if B % bt:
            continue
        blk = bt * per_batch_bytes
        if blk > target_bytes or blk > max_bytes:
            continue
        if (B // bt) < min_steps:
            continue
        best = bt
    return best


def _choose_bt_rows(B, C, sublane, per_batch_bytes, target_bytes, max_bytes,
                    max_rows=512):
    """Bt for the row-packed small-C path: Bt*C rows must be a multiple of the
    sublane count (or the full extent), block <= target, prefer >= min(B,4)
    grid steps, and keep the block-diagonal weights small (rows <= max_rows)."""
    full_rows = B * C
    valid = []
    for bt in range(1, B + 1):
        if B % bt:
            continue
        rows = bt * C
        if rows % sublane != 0 and rows != full_rows:
            continue
        if rows > max_rows:
            continue
        if bt * per_batch_bytes > max_bytes:
            continue
        valid.append(bt)
    if not valid:
        return None
    min_steps = min(B, 4)
    good = [bt for bt in valid
            if bt * per_batch_bytes <= target_bytes and (B // bt) >= min_steps]
    if good:
        return max(good)
    good = [bt for bt in valid if bt * per_batch_bytes <= target_bytes]
    if good:
        return min(good)            # smallest -> most grid steps
    return min(valid)


# ---------------------------------------------------------------------------
# Fallback: spatial-tiled two-pass path (per-batch slab does not fit VMEM)
# ---------------------------------------------------------------------------

def _se_spatial(x3, w1, b1, w2, b2, *, target_bytes, ceiling):
    B, C, HW = x3.shape
    itemsize = x3.dtype.itemsize
    inv_hw = float(1.0 / HW)

    # Spatial tile: multiple of 128 lanes, sized toward the block target.
    # TODO(synk): no channel tiling — assumes C*128*itemsize fits in VMEM.
    if HW <= 128:
        hw_t = HW
    else:
        hw_t_target = max(128, (target_bytes // max(1, C * itemsize)) // 128 * 128)
        hw_t = max(128, min(hw_t_target, (HW // 128) * 128))
    grid_hw = pl.cdiv(HW, hw_t)
    needs_mask = (HW % hw_t) != 0

    block_bytes = C * hw_t * itemsize
    vmem_limit = int(min(ceiling, max(32 << 20, 6 * block_bytes + (4 << 20))))

    # Pass 1: spatially tiled global-average pool (f32 accumulator output).
    pooled3 = pl.pallas_call(
        functools.partial(_pool_kernel, inv_hw=inv_hw, hw=HW, hw_t=hw_t,
                          needs_mask=needs_mask),
        out_shape=jax.ShapeDtypeStruct((B, C, 1), jnp.float32),
        grid_spec=pltpu.PrefetchScalarGridSpec(
            num_scalar_prefetch=0,
            grid=(B, grid_hw),
            in_specs=[pl.BlockSpec((1, C, hw_t), lambda b, s: (b, 0, s))],
            out_specs=pl.BlockSpec((1, C, 1), lambda b, s: (b, 0, 0)),
        ),
        compiler_params=pltpu.CompilerParams(
            dimension_semantics=("parallel", "arbitrary"),
            vmem_limit_bytes=vmem_limit,
        ),
    )(x3)

    # Tiny FC + sigmoid in plain JAX (negligible vs. the slab traffic).
    pooled = pooled3[:, :, 0]                                        # (B, C) f32
    w1f = w1.astype(jnp.float32)
    w2f = w2.astype(jnp.float32)
    h = jnp.maximum(pooled @ w1f.T + b1.astype(jnp.float32)[None, :], 0.0)
    scale = jax.nn.sigmoid(h @ w2f.T + b2.astype(jnp.float32)[None, :])
    scale = scale.astype(x3.dtype)[:, :, None]                       # (B, C, 1)

    # Pass 2: spatially tiled rescale.
    out3 = pl.pallas_call(
        _rescale_kernel,
        out_shape=jax.ShapeDtypeStruct((B, C, HW), x3.dtype),
        grid_spec=pltpu.PrefetchScalarGridSpec(
            num_scalar_prefetch=0,
            grid=(B, grid_hw),
            in_specs=[pl.BlockSpec((1, C, hw_t), lambda b, s: (b, 0, s)),
                      pl.BlockSpec((1, C, 1), lambda b, s: (b, 0, 0))],
            out_specs=pl.BlockSpec((1, C, hw_t), lambda b, s: (b, 0, s)),
        ),
        compiler_params=pltpu.CompilerParams(
            dimension_semantics=("parallel", "parallel"),
            vmem_limit_bytes=vmem_limit,
        ),
    )(x3, scale)
    return out3


# ---------------------------------------------------------------------------
# Wrapper
# ---------------------------------------------------------------------------

def se_module(x, w1, b1, w2, b2, *, block_target_bytes=4 << 20, path=None):
    """SE forward. x: (B, C, H, W); w1: (R, C), b1: (R,); w2: (C, R), b2: (C,).

    path: None (auto) | "rows" | "batch" | "spatial".
    """
    B, C, H, W = x.shape
    HW = H * W
    R = w1.shape[0]
    dtype = x.dtype
    itemsize = dtype.itemsize
    sublane = 8 * max(1, 4 // itemsize)          # 8 (f32) / 16 (bf16) / 32 (i8)
    inv_hw = float(1.0 / HW)

    ceiling = _vmem_ceiling()
    # 4x = double-buffered input + output blocks; leave 4 MiB slack for weights
    # and Mosaic internal scratch.
    max_block_bytes = max(1 << 20, (ceiling - (4 << 20)) // 4)
    target_bytes = min(block_target_bytes, max_block_bytes)
    per_batch_bytes = C * HW * itemsize

    # Unpadded row-major collapse: free in XLA (no data movement).
    x3 = x.reshape(B, C, HW)

    if path is None:
        if per_batch_bytes > max_block_bytes:
            path = "spatial"
        elif C < sublane:
            path = "rows"
        else:
            path = "batch"

    bt_rows = None
    if path == "rows":
        bt_rows = _choose_bt_rows(B, C, sublane, per_batch_bytes,
                                  target_bytes, max_block_bytes)
        if bt_rows is None:
            path = "batch"
    if path == "batch" and per_batch_bytes > max_block_bytes:
        path = "spatial"

    if path == "spatial":
        out3 = _se_spatial(x3, w1, b1, w2, b2,
                           target_bytes=target_bytes, ceiling=ceiling)
        return out3.reshape(B, C, H, W)

    if path == "rows":
        # Small-C path: pack (B, C) into the sublane axis -> dense vregs.
        bt = bt_rows
        rows = bt * C
        grid_b = B // bt
        x2 = x3.reshape(B * C, HW)

        eye = jnp.eye(bt, dtype=jnp.float32)
        a1 = jnp.kron(eye, w1.astype(jnp.float32))               # (bt*R, bt*C)
        a2 = jnp.kron(eye, w2.astype(jnp.float32))               # (bt*C, bt*R)
        b1r = jnp.tile(b1.astype(jnp.float32), bt).reshape(bt * R, 1)
        b2r = jnp.tile(b2.astype(jnp.float32), bt).reshape(bt * C, 1)

        block_bytes = rows * HW * itemsize
        weight_bytes = 4 * (a1.size + a2.size + b1r.size + b2r.size)
        vmem_limit = int(min(ceiling,
                             max(32 << 20,
                                 4 * block_bytes + 2 * weight_bytes + (4 << 20))))

        out2 = pl.pallas_call(
            functools.partial(_se_kernel_rows, inv_hw=inv_hw),
            out_shape=jax.ShapeDtypeStruct((B * C, HW), dtype),
            grid_spec=pltpu.PrefetchScalarGridSpec(
                num_scalar_prefetch=0,
                grid=(grid_b,),
                in_specs=[
                    pl.BlockSpec((rows, HW), lambda b: (b, 0)),       # x slab
                    # Constant block index -> weights stay VMEM-resident.
                    pl.BlockSpec((bt * R, bt * C), lambda b: (0, 0)),
                    pl.BlockSpec((bt * R, 1), lambda b: (0, 0)),
                    pl.BlockSpec((bt * C, bt * R), lambda b: (0, 0)),
                    pl.BlockSpec((bt * C, 1), lambda b: (0, 0)),
                ],
                out_specs=pl.BlockSpec((rows, HW), lambda b: (b, 0)),
            ),
            compiler_params=pltpu.CompilerParams(
                dimension_semantics=("parallel",),
                vmem_limit_bytes=vmem_limit,
            ),
        )(x2, a1, b1r, a2, b2r)
        return out2.reshape(B, C, H, W)

    # Default "batch" path: (Bt, C, HW) slabs.
    bt = _choose_bt_batch(B, per_batch_bytes, target_bytes, max_block_bytes)
    grid_b = B // bt

    w1t = w1.T.astype(jnp.float32)                                   # (C, R)
    w2t = w2.T.astype(jnp.float32)                                   # (R, C)
    b1r = b1.reshape(1, R).astype(jnp.float32)
    b2r = b2.reshape(1, C).astype(jnp.float32)

    block_bytes = bt * per_batch_bytes
    weight_bytes = 4 * (w1t.size + w2t.size + b1r.size + b2r.size)
    vmem_limit = int(min(ceiling,
                         max(32 << 20,
                             4 * block_bytes + 2 * weight_bytes + (4 << 20))))

    out3 = pl.pallas_call(
        functools.partial(_se_kernel_batch, inv_hw=inv_hw),
        out_shape=jax.ShapeDtypeStruct((B, C, HW), dtype),
        grid_spec=pltpu.PrefetchScalarGridSpec(
            num_scalar_prefetch=0,
            grid=(grid_b,),
            in_specs=[
                pl.BlockSpec((bt, C, HW), lambda b: (b, 0, 0)),       # x slab
                pl.BlockSpec((C, R), lambda b: (0, 0)),               # fc1 w^T
                pl.BlockSpec((1, R), lambda b: (0, 0)),               # fc1 bias
                pl.BlockSpec((R, C), lambda b: (0, 0)),               # fc2 w^T
                pl.BlockSpec((1, C), lambda b: (0, 0)),               # fc2 bias
            ],
            out_specs=pl.BlockSpec((bt, C, HW), lambda b: (b, 0, 0)),
        ),
        compiler_params=pltpu.CompilerParams(
            dimension_semantics=("parallel",),
            vmem_limit_bytes=vmem_limit,
        ),
    )(x3, w1t, b1r, w2t, b2r)
    return out3.reshape(B, C, H, W)


# ---------------------------------------------------------------------------
# Reference & test
# ---------------------------------------------------------------------------

def se_reference(x, w1, b1, w2, b2):
    """Pure-JAX reference mirroring the PyTorch module."""
    se = jnp.mean(x, axis=(2, 3), keepdims=True)                 # (B, C, 1, 1)
    h = jnp.einsum('rc,bcxy->brxy', w1, se) + b1[None, :, None, None]
    h = jnp.maximum(h, 0.0)
    s = jnp.einsum('cr,brxy->bcxy', w2, h) + b2[None, :, None, None]
    return x * jax.nn.sigmoid(s)


if __name__ == "__main__":
    master = jax.random.PRNGKey(0)

    def make_case(key, B, C, R, H, W):
        kx, kw1, kb1, kw2, kb2 = jax.random.split(key, 5)
        x = jax.random.normal(kx, (B, C, H, W), dtype=jnp.float32)
        w1 = jax.random.normal(kw1, (R, C), dtype=jnp.float32) * 0.5
        b1 = jax.random.normal(kb1, (R,), dtype=jnp.float32) * 0.1
        w2 = jax.random.normal(kw2, (C, R), dtype=jnp.float32) * 0.5
        b2 = jax.random.normal(kb2, (C,), dtype=jnp.float32) * 0.1
        return x, w1, b1, w2, b2

    cases = [
        ((2, 4, 2, 16, 16), None),        # small C -> row-packed path
        ((2, 16, 4, 7, 7), None),         # C >= 8, HW=49 (not /128) -> batch path
        ((2, 8, 4, 11, 13), "spatial"),   # force the spatial-tiled fallback
    ]
    keys = jax.random.split(master, len(cases))
    for k, ((B, C, R, H, W), forced_path) in zip(keys, cases):
        x, w1, b1, w2, b2 = make_case(k, B, C, R, H, W)
        out = jax.block_until_ready(se_module(x, w1, b1, w2, b2, path=forced_path))
        ref = se_reference(x, w1, b1, w2, b2)
        assert out.shape == (B, C, H, W)
        assert jnp.allclose(out, ref, atol=1e-5, rtol=1e-5), (B, C, R, H, W, forced_path)

    print("KERNEL_OK")
</pallas_src>

<mosaic_0001>
module attributes {stable_mosaic.version = 11 : i64} {
  func.func @_se_kernel_rows(%arg0: i32, %arg1: memref<8x256xf32, #tpu.memory_space<vmem>>, %arg2: memref<4x8xf32, #tpu.memory_space<vmem>>, %arg3: memref<4x1xf32, #tpu.memory_space<vmem>>, %arg4: memref<8x4xf32, #tpu.memory_space<vmem>>, %arg5: memref<8x1xf32, #tpu.memory_space<vmem>>, %arg6: memref<8x256xf32, #tpu.memory_space<vmem>>) attributes {dimension_semantics = [#tpu.dimension_semantics<parallel>], iteration_bounds = array<i64: 1>, scalar_prefetch = 0 : i64, scratch_operands = 0 : i64, tpu.core_type = #tpu.core_type<tc>, window_params = [{transform_indices = @transform_0, window_bounds = array<i64: 8, 256>}, {pipeline_mode = #tpu.pipeline_mode<synchronous>, transform_indices = @transform_1, window_bounds = array<i64: 4, 8>}, {pipeline_mode = #tpu.pipeline_mode<synchronous>, transform_indices = @transform_2, window_bounds = array<i64: 4, 1>}, {pipeline_mode = #tpu.pipeline_mode<synchronous>, transform_indices = @transform_3, window_bounds = array<i64: 8, 4>}, {pipeline_mode = #tpu.pipeline_mode<synchronous>, transform_indices = @transform_4, window_bounds = array<i64: 8, 1>}, {transform_indices = @transform_5, window_bounds = array<i64: 8, 256>}]} {
    %c0 = arith.constant 0 : index
    %c0_0 = arith.constant 0 : index
    %0 = vector.load %arg1[%c0, %c0_0] : memref<8x256xf32, #tpu.memory_space<vmem>>, vector<8x256xf32>
    %cst = arith.constant dense<0.000000e+00> : vector<8xf32>
    %1 = vector.multi_reduction <add>, %0, %cst [1] : vector<8x256xf32> to vector<8xf32>
    %2 = vector.shape_cast %1 : vector<8xf32> to vector<8x1xf32>
    %cst_1 = arith.constant 3.906250e-03 : f32
    %3 = vector.broadcast %cst_1 : f32 to vector<8x1xf32>
    %4 = arith.mulf %2, %3 : vector<8x1xf32>
    %c0_2 = arith.constant 0 : index
    %c0_3 = arith.constant 0 : index
    %5 = vector.load %arg2[%c0_2, %c0_3] : memref<4x8xf32, #tpu.memory_space<vmem>>, vector<4x8xf32>
    %cst_4 = arith.constant dense<0.000000e+00> : vector<4x1xf32>
    %6 = tpu.matmul %5, %4, %cst_4 {dimension_numbers = #tpu.dot_dimension_numbers<[1], [0], [0], [1], [0, 0, 1, 1], [], []>} : vector<4x8xf32>, vector<8x1xf32>, vector<4x1xf32> -> vector<4x1xf32>
    %c0_5 = arith.constant 0 : index
    %c0_6 = arith.constant 0 : index
    %7 = vector.load %arg3[%c0_5, %c0_6] : memref<4x1xf32, #tpu.memory_space<vmem>>, vector<4x1xf32>
    %8 = arith.addf %6, %7 : vector<4x1xf32>
    %cst_7 = arith.constant 0.000000e+00 : f32
    %9 = vector.broadcast %cst_7 : f32 to vector<4x1xf32>
    %10 = arith.maximumf %8, %9 : vector<4x1xf32>
    %c0_8 = arith.constant 0 : index
    %c0_9 = arith.constant 0 : index
    %11 = vector.load %arg4[%c0_8, %c0_9] : memref<8x4xf32, #tpu.memory_space<vmem>>, vector<8x4xf32>
    %cst_10 = arith.constant dense<0.000000e+00> : vector<8x1xf32>
    %12 = tpu.matmul %11, %10, %cst_10 {dimension_numbers = #tpu.dot_dimension_numbers<[1], [0], [0], [1], [0, 0, 1, 1], [], []>} : vector<8x4xf32>, vector<4x1xf32>, vector<8x1xf32> -> vector<8x1xf32>
    %c0_11 = arith.constant 0 : index
    %c0_12 = arith.constant 0 : index
    %13 = vector.load %arg5[%c0_11, %c0_12] : memref<8x1xf32, #tpu.memory_space<vmem>>, vector<8x1xf32>
    %14 = arith.addf %12, %13 : vector<8x1xf32>
    %15 = arith.negf %14 : vector<8x1xf32>
    %16 = math.exp %15 : vector<8x1xf32>
    %cst_13 = arith.constant 1.000000e+00 : f32
    %17 = vector.broadcast %cst_13 : f32 to vector<8x1xf32>
    %18 = arith.addf %17, %16 : vector<8x1xf32>
    %19 = arith.divf %17, %18 : vector<8x1xf32>
    %20 = vector.broadcast %19 : vector<8x1xf32> to vector<8x256xf32>
    %21 = arith.mulf %0, %20 : vector<8x256xf32>
    %c0_14 = arith.constant 0 : index
    %c0_15 = arith.constant 0 : index
    %22 = vector.load %arg6[%c0_14, %c0_15] : memref<8x256xf32, #tpu.memory_space<vmem>>, vector<8x256xf32>
    tpu.vector_store %arg6[%c0_14, %c0_15], %21 {strides = array<i32>} : memref<8x256xf32, #tpu.memory_space<vmem>>, vector<8x256xf32>,
    return
  }
  func.func @transform_0(%arg0: i32) -> (i32, i32) {
    %c0_i32 = arith.constant 0 : i32
    %c0_i32_0 = arith.constant 0 : i32
    return %arg0, %c0_i32 : i32, i32
  }
  func.func @transform_1(%arg0: i32) -> (i32, i32) {
    %c0_i32 = arith.constant 0 : i32
    %c0_i32_0 = arith.constant 0 : i32
    %c0_i32_1 = arith.constant 0 : i32
    return %c0_i32, %c0_i32_0 : i32, i32
  }
  func.func @transform_2(%arg0: i32) -> (i32, i32) {
    %c0_i32 = arith.constant 0 : i32
    %c0_i32_0 = arith.constant 0 : i32
    %c0_i32_1 = arith.constant 0 : i32
    return %c0_i32, %c0_i32_0 : i32, i32
  }
  func.func @transform_3(%arg0: i32) -> (i32, i32) {
    %c0_i32 = arith.constant 0 : i32
    %c0_i32_0 = arith.constant 0 : i32
    %c0_i32_1 = arith.constant 0 : i32
    return %c0_i32, %c0_i32_0 : i32, i32
  }
  func.func @transform_4(%arg0: i32) -> (i32, i32) {
    %c0_i32 = arith.constant 0 : i32
    %c0_i32_0 = arith.constant 0 : i32
    %c0_i32_1 = arith.constant 0 : i32
    return %c0_i32, %c0_i32_0 : i32, i32
  }
  func.func @transform_5(%arg0: i32) -> (i32, i32) {
    %c0_i32 = arith.constant 0 : i32
    %c0_i32_0 = arith.constant 0 : i32
    return %arg0, %c0_i32 : i32, i32
  }
}

</mosaic_0001>

<llo_original>
// kernel: tpu_custom_call.1
$region0: #{tpu_custom_call.1}
  #allocation0 [shape = 'u32[]', space=smem, size = 0x4, offset = 0x4, fixed_abs, tag = 'smem constant byte address 0x4 - core index']
  #allocation1 [shape = 'u32[144,128]{1,0:T(1,128)}', space=vmem, size = 0x12000, scoped, tag = 'internal scratch']
  %s0 = inlined_call_operand.vmem [shape: f32[8,256], index: 0, kind: input, shape index: {}]
  %s1 = inlined_call_operand.vmem [shape: f32[4,8], index: 1, kind: input, shape index: {}]
  %s2 = inlined_call_operand.vmem [shape: f32[4,1], index: 2, kind: input, shape index: {}]
  %s3 = inlined_call_operand.vmem [shape: f32[8,4], index: 3, kind: input, shape index: {}]
  %s4 = inlined_call_operand.vmem [shape: f32[8,1], index: 4, kind: input, shape index: {}]
  %s5 = inlined_call_operand.hbm [shape: f32[8,256], index: 5, kind: output, shape index: {}]
  %s6 = sld [smem:[#allocation0]]
  $region30: #{tpu_custom_call.1} parent=0
    _
  %s8 = ssub.s32 1, %s6
  %s9 = scalar_select 0, %s8, %s6
  $region1: #{tpu_custom_call.1} parent=0
    #allocation2 [shape = 'u8[8192]{0}', space=vmem, size = 0x2000, scoped, tag = 'output window, operand 0, single buffered']
    #allocation3 [shape = 's32[1]{0}', space=sflag, size = 0x4, scoped, tag = 'scoped memory for tpu_custom_call.1']
    %10 = vsyncpa [#allocation3], 0
    // Predicated region
    $region2: #{tpu_custom_call.1} parent=1 // pred_check
      _
    $region3: #{tpu_custom_call.1} parent=1 // pred_check_branch
      %12 = sbr.rel (0) target = $region5
    $region4: #{tpu_custom_call.1} parent=1 // pred_region
      _
    $region5: #{tpu_custom_call.1} parent=1 // pred_fallthru
      _
    // Predicated region
    $region6: #{tpu_custom_call.1} parent=1 // pred_check
      _
    $region7: #{tpu_custom_call.1} parent=1 // pred_check_branch
      %14 = sbr.rel (0) target = $region9
    $region8: #{tpu_custom_call.1} parent=1 // pred_region
      _
    $region9: #{tpu_custom_call.1} parent=1 // pred_fallthru
      _
    // Predicated region
    $region10: #{tpu_custom_call.1} parent=1 // pred_check
      _
    $region11: #{tpu_custom_call.1} parent=1 // pred_check_branch
      %16 = sbr.rel (0) target = $region13
    $region12: #{tpu_custom_call.1} parent=1 // pred_region
      _
    $region13: #{tpu_custom_call.1} parent=1 // pred_fallthru
      _
    // Predicated region
    $region14: #{tpu_custom_call.1} parent=1 // pred_check
      _
    $region15: #{tpu_custom_call.1} parent=1 // pred_check_branch
      %18 = sbr.rel (0) target = $region17
    $region16: #{tpu_custom_call.1} parent=1 // pred_region
      _
    $region17: #{tpu_custom_call.1} parent=1 // pred_fallthru
      _
    // Predicated region
    $region18: #{tpu_custom_call.1} parent=1 // pred_check
      _
    $region19: #{tpu_custom_call.1} parent=1 // pred_check_branch
      %20 = sbr.rel (0) target = $region21
    $region20: #{tpu_custom_call.1} parent=1 // pred_region
      _
    $region21: #{tpu_custom_call.1} parent=1 // pred_fallthru
      _
    %v21 = vld [vmem:[%s0] sm:$0xff]
    %v22 = vld [vmem:[%s0 + $0x8] sm:$0xff]
    %v23 = vadd.f32 %v21, %v22
    %24 = vadd.xlane.f32.xlu0 %v23
    %v25 = vpop.xlane.xlu0 %24
    %v26 = vmul.f32 %v25, 0.00390625
    %v27 = vld [vmem:[%s1] sm:$0xf]
    %v28 = vld [vmem:[%s2] sm:$0xf]
    %vm29 = vcmask 64512
    %v31 = vsel %vm29, %v27, 0
    %33 = vmatprep.subr.mxu0 0.0
    %34 = vmatpush1.msra.mxu0 %v26
    %35 = vmatprep.subr.mxu0 0.0
    %36 = vmatpush1.msra.mxu0 0.0
    %37 = vmatprep.subr.mxu0 0.0
    %38 = vmatpush1.msra.mxu0 0.0
    %39 = vmatprep.subr.mxu0 0.0
    %40 = vmatpush1.msra.mxu0 0.0
    %41 = vmatprep.subr.mxu0 0.0
    %42 = vmatpush1.msra.mxu0 0.0
    %43 = vmatprep.subr.mxu0 0.0
    %44 = vmatpush1.msra.mxu0 0.0
    %45 = vmatprep.subr.mxu0 0.0
    %46 = vmatpush1.msra.mxu0 0.0
    %47 = vmatprep.subr.mxu0 0.0
    %48 = vmatpush1.msra.mxu0 0.0
    %49 = vmatprep.subr.mxu0 0.0
    %50 = vmatpush1.msra.mxu0 0.0
    %51 = vmatprep.subr.mxu0 0.0
    %52 = vmatpush1.msra.mxu0 0.0
    %53 = vmatprep.subr.mxu0 0.0
    %54 = vmatpush1.msra.mxu0 0.0
    %55 = vmatprep.subr.mxu0 0.0
    %56 = vmatpush1.msra.mxu0 0.0
    %57 = vmatprep.subr.mxu0 0.0
    %58 = vmatpush1.msra.mxu0 0.0
    %59 = vmatprep.subr.mxu0 0.0
    %60 = vmatpush1.msra.mxu0 0.0
    %61 = vmatprep.subr.mxu0 0.0
    %62 = vmatpush1.msra.mxu0 0.0
    %63 = vmatprep.subr.mxu0 0.0
    %64 = vmatpush1.msra.mxu0 0.0
    %65 = vmatprep.subr.mxu0 0.0
    %66 = vmatpush1.msra.mxu0 0.0
    %67 = vmatprep.subr.mxu0 0.0
    %68 = vmatpush1.msra.mxu0 0.0
    %69 = vmatprep.subr.mxu0 0.0
    %70 = vmatpush1.msra.mxu0 0.0
    %71 = vmatprep.subr.mxu0 0.0
    %72 = vmatpush1.msra.mxu0 0.0
    %73 = vmatprep.subr.mxu0 0.0
    %74 = vmatpush1.msra.mxu0 0.0
    %75 = vmatprep.subr.mxu0 0.0
    %76 = vmatpush1.msra.mxu0 0.0
    %77 = vmatprep.subr.mxu0 0.0
    %78 = vmatpush1.msra.mxu0 0.0
    %79 = vmatprep.subr.mxu0 0.0
    %80 = vmatpush1.msra.mxu0 0.0
    %81 = vmatprep.subr.mxu0 0.0
    %82 = vmatpush1.msra.mxu0 0.0
    %83 = vmatprep.subr.mxu0 0.0
    %84 = vmatpush1.msra.mxu0 0.0
    %85 = vmatprep.subr.mxu0 0.0
    %86 = vmatpush1.msra.mxu0 0.0
    %87 = vmatprep.subr.mxu0 0.0
    %88 = vmatpush1.msra.mxu0 0.0
    %89 = vmatprep.subr.mxu0 0.0
    %90 = vmatpush1.msra.mxu0 0.0
    %91 = vmatprep.subr.mxu0 0.0
    %92 = vmatpush1.msra.mxu0 0.0
    %93 = vmatprep.subr.mxu0 0.0
    %94 = vmatpush1.msra.mxu0 0.0
    %95 = vmatprep.subr.mxu0 0.0
    %96 = vmatpush1.msra.mxu0 0.0
    %97 = vmatprep.mubr.f32.mxu0 0.0
    %98 = vmatmul.mubr.f32.gmra.mrb[0].mxu0 %v31
    %v99 = vpop.f32.mrb[0].mxu0
    %v100 = vadd.f32 %v28, %v99
    %v101 = vpop.f32.mrb[0].mxu0
    %102 = vdwg.mxu0
    %v103 = vmax.f32 %v100, 0.0
    %v104 = vld [vmem:[%s3] sm:$0xff]
    %v105 = vld [vmem:[%s4] sm:$0xff]
    %vm106 = vcmask 31744
    %v108 = vsel %vm106, %v104, 0
    %vm110 = vcmask 1043456
    %v112 = vsel %vm110, %v103, 0
    %114 = vmatprep.subr.mxu0 0.0
    %115 = vmatpush1.msra.mxu0 %v112
    %116 = vmatprep.subr.mxu0 0.0
    %117 = vmatpush1.msra.mxu0 0.0
    %118 = vmatprep.subr.mxu0 0.0
    %119 = vmatpush1.msra.mxu0 0.0
    %120 = vmatprep.subr.mxu0 0.0
    %121 = vmatpush1.msra.mxu0 0.0
    %122 = vmatprep.subr.mxu0 0.0
    %123 = vmatpush1.msra.mxu0 0.0
    %124 = vmatprep.subr.mxu0 0.0
    %125 = vmatpush1.msra.mxu0 0.0
    %126 = vmatprep.subr.mxu0 0.0
    %127 = vmatpush1.msra.mxu0 0.0
    %128 = vmatprep.subr.mxu0 0.0
    %129 = vmatpush1.msra.mxu0 0.0
    %130 = vmatprep.subr.mxu0 0.0
    %131 = vmatpush1.msra.mxu0 0.0
    %132 = vmatprep.subr.mxu0 0.0
    %133 = vmatpush1.msra.mxu0 0.0
    %134 = vmatprep.subr.mxu0 0.0
    %135 = vmatpush1.msra.mxu0 0.0
    %136 = vmatprep.subr.mxu0 0.0
    %137 = vmatpush1.msra.mxu0 0.0
    %138 = vmatprep.subr.mxu0 0.0
    %139 = vmatpush1.msra.mxu0 0.0
    %140 = vmatprep.subr.mxu0 0.0
    %141 = vmatpush1.msra.mxu0 0.0
    %142 = vmatprep.subr.mxu0 0.0
    %143 = vmatpush1.msra.mxu0 0.0
    %144 = vmatprep.subr.mxu0 0.0
    %145 = vmatpush1.msra.mxu0 0.0
    %146 = vmatprep.subr.mxu0 0.0
    %147 = vmatpush1.msra.mxu0 0.0
    %148 = vmatprep.subr.mxu0 0.0
    %149 = vmatpush1.msra.mxu0 0.0
    %150 = vmatprep.subr.mxu0 0.0
    %151 = vmatpush1.msra.mxu0 0.0
    %152 = vmatprep.subr.mxu0 0.0
    %153 = vmatpush1.msra.mxu0 0.0
    %154 = vmatprep.subr.mxu0 0.0
    %155 = vmatpush1.msra.mxu0 0.0
    %156 = vmatprep.subr.mxu0 0.0
    %157 = vmatpush1.msra.mxu0 0.0
    %158 = vmatprep.subr.mxu0 0.0
    %159 = vmatpush1.msra.mxu0 0.0
    %160 = vmatprep.subr.mxu0 0.0
    %161 = vmatpush1.msra.mxu0 0.0
    %162 = vmatprep.subr.mxu0 0.0
    %163 = vmatpush1.msra.mxu0 0.0
    %164 = vmatprep.subr.mxu0 0.0
    %165 = vmatpush1.msra.mxu0 0.0
    %166 = vmatprep.subr.mxu0 0.0
    %167 = vmatpush1.msra.mxu0 0.0
    %168 = vmatprep.subr.mxu0 0.0
    %169 = vmatpush1.msra.mxu0 0.0
    %170 = vmatprep.subr.mxu0 0.0
    %171 = vmatpush1.msra.mxu0 0.0
    %172 = vmatprep.subr.mxu0 0.0
    %173 = vmatpush1.msra.mxu0 0.0
    %174 = vmatprep.subr.mxu0 0.0
    %175 = vmatpush1.msra.mxu0 0.0
    %176 = vmatprep.subr.mxu0 0.0
    %177 = vmatpush1.msra.mxu0 0.0
    %178 = vmatprep.mubr.f32.mxu0 0.0
    %179 = vmatmul.mubr.f32.gmra.mrb[0].mxu0 %v108
    %v180 = vpop.f32.mrb[0].mxu0
    %v181 = vadd.f32 %v105, %v180
    %v182 = vpop.f32.mrb[0].mxu0
    %183 = vdwg.mxu0
    %v184 = vxor.u32 %v181, 2147483648
    %v185 = vmul.f32 %v184, 1.442695
    %v186 = vpow.pop %v185
    %v187 = vadd.f32 %v186, 1.0
    %v188 = vrcp.pop %v187
    %v189 = vmul.f32 1.0, %v188
    %191 = vset.pattern.permute.xlu0 0
    %192 = vperm.xlu0 %191, %v189
    %v193 = vpop.permute.xlu0 %192
    %v195 = vmul.f32 %v21, %v193
    %v196 = vmul.f32 %v22, %v193
    %197 = vst [vmem:[#allocation2] sm:$0xff] %v195
    %198 = vst [vmem:[#allocation2 + $0x8] sm:$0xff] %v196
    // Predicated region
    $region22: #{tpu_custom_call.1} parent=1 // pred_check
      _
    $region23: #{tpu_custom_call.1} parent=1 // pred_check_branch
      %200 = sbr.rel (0) target = $region25
    $region24: #{tpu_custom_call.1} parent=1 // pred_region
      %s202 = ssub.s32 256, 256
      %203 = vsyncadd [#allocation3], %s202
      %s205 = sshll.u32 [#allocation2], 4
      %s206 = int_to_ptr.vmem [resolvable:$true] %s205
      %208 = dma.vmem_to_hbm [thread:$0]  %s206, 256, %s5, [#allocation3]
    $region25: #{tpu_custom_call.1} parent=1 // pred_fallthru
      _
    // Predicated region
    $region26: #{tpu_custom_call.1} parent=1 // pred_check
      _
    $region27: #{tpu_custom_call.1} parent=1 // pred_check_branch
      %210 = sbr.rel (0) target = $region29
    $region28: #{tpu_custom_call.1} parent=1 // pred_region
      %211 = dma.done [#allocation3], 256
    $region29: #{tpu_custom_call.1} parent=1 // pred_fallthru
      _
    %212 = vsyncpa [#allocation3], 1

</llo_original>
